<compile_context>
chip_gen: v7x
topology: tpu7x:2x2x1
jax: 0.10.0
libtpu: 0.0.40
codegen_flags: <defaults>
</compile_context>

<pallas_src>
import jax
import jax.numpy as jnp
from jax.experimental import pallas as pl
from jax.experimental.pallas import tpu as pltpu


def policy_net_kernel(x_ref, p_ref, y_ref):
    x = x_ref[...]                        # (bb, S)
    p = p_ref[...]                        # (S+3, H) packed params
    S = x.shape[1]

    w1 = p[0:S, :]                        # (S, H)  fc1 weight, (in, out) layout
    b1 = p[S:S + 1, :]                    # (1, H)  fc1 bias
    w2 = p[S + 1:S + 2, :]                # (1, H)  fc2 weight (single output row)
    b2 = p[S + 2:S + 3, 0:1]              # (1, 1)  fc2 bias

    # fc1 + relu  (MXU matmul, no transpose needed)
    h = jnp.dot(x, w1, preferred_element_type=jnp.float32) + b1    # (bb, H)
    h = jnp.maximum(h, 0.0)

    # fc2 + tanh: N=1, so do it on the VPU (multiply + lane reduce), not the MXU
    out = jnp.sum(h * w2, axis=1, keepdims=True) + b2               # (bb, 1)
    y_ref[...] = jnp.tanh(out)


def pack_policy_params(v1, g1, b1, v2, g2, b2):
    """Apply weight_norm once (hoisted out of the per-call path) and pack all
    parameters into a single (S+3, H) f32 slab:
      rows 0..S-1 : fc1 weight in (in, out) layout
      row  S      : fc1 bias
      row  S+1    : fc2 weight
      row  S+2    : fc2 bias (broadcast across the row)
    """
    H, S = v1.shape
    # torch weight_norm(dim=0): per output row, normalize over the input dim.
    w1 = g1 * v1 * jax.lax.rsqrt(jnp.sum(v1 * v1, axis=1, keepdims=True))  # (H, S)
    w2 = g2 * v2 * jax.lax.rsqrt(jnp.sum(v2 * v2, axis=1, keepdims=True))  # (1, H)
    return jnp.concatenate(
        [
            w1.T,                                   # (S, H)
            b1.reshape(1, H),                       # (1, H)
            w2.reshape(1, H),                       # (1, H)
            jnp.broadcast_to(b2.reshape(1, 1), (1, H)),
        ],
        axis=0,
    ).astype(jnp.float32)


def policy_net_forward(x, params):
    B, S = x.shape
    H = params.shape[1]
    bb = B if B <= 128 else 128           # batch tile (one block when batch is small)
    grid = (pl.cdiv(B, bb),)
    return pl.pallas_call(
        policy_net_kernel,
        out_shape=jax.ShapeDtypeStruct((B, 1), jnp.float32),
        grid=grid,
        in_specs=[
            pl.BlockSpec((bb, S), lambda i: (i, 0)),
            pl.BlockSpec((S + 3, H), lambda i: (0, 0)),
        ],
        out_specs=pl.BlockSpec((bb, 1), lambda i: (i, 0)),
        compiler_params=pltpu.CompilerParams(
            dimension_semantics=("parallel",)),
    )(x, params)


def policy_net_ref(x, v1, g1, b1, v2, g2, b2):
    w1 = g1 * v1 / jnp.linalg.norm(v1, axis=1, keepdims=True)
    h = jnp.maximum(x @ w1.T + b1, 0.0)
    w2 = g2 * v2 / jnp.linalg.norm(v2, axis=1, keepdims=True)
    return jnp.tanh(h @ w2.T + b2)


if __name__ == "__main__":
    # state_dim=8, hidden_dim=32, batch=8 (one full sublane group).
    B, S, H = 8, 8, 32
    key = jax.random.PRNGKey(0)
    kx, kv1, kb1, kv2, kb2 = jax.random.split(key, 5)

    x = jax.random.normal(kx, (B, S), dtype=jnp.float32)

    # fc1: Linear(S, H) -> v: (H, S), g initialised to row norms (as torch
    # weight_norm does), bias kept 2D as (1, H).
    bound1 = 1.0 / jnp.sqrt(S)
    v1 = jax.random.uniform(kv1, (H, S), minval=-bound1, maxval=bound1,
                            dtype=jnp.float32)
    g1 = jnp.linalg.norm(v1, axis=1, keepdims=True)            # (H, 1)
    b1 = jax.random.uniform(kb1, (1, H), minval=-bound1, maxval=bound1,
                            dtype=jnp.float32)

    # fc2: Linear(H, 1) -> v: (1, H), g: (1, 1), bias: (1, 1).
    bound2 = 1.0 / jnp.sqrt(H)
    v2 = jax.random.uniform(kv2, (1, H), minval=-bound2, maxval=bound2,
                            dtype=jnp.float32)
    g2 = jnp.linalg.norm(v2, axis=1, keepdims=True)            # (1, 1)
    b2 = jax.random.uniform(kb2, (1, 1), minval=-bound2, maxval=bound2,
                            dtype=jnp.float32)

    # TODO(synk): action_bound / bias attributes are unused in the reference
    # forward(), so they are intentionally not part of the kernel.

    # Weight-norm + packing done ONCE per parameter update, not per forward call.
    params = pack_policy_params(v1, g1, b1, v2, g2, b2)

    y = policy_net_forward(x, params)
    y = jax.block_until_ready(y)

    y_ref = policy_net_ref(x, v1, g1, b1, v2, g2, b2)
    assert y.shape == (B, 1)
    assert jnp.allclose(y, y_ref, atol=1e-5, rtol=1e-5)
    print("KERNEL_OK")
</pallas_src>

<mosaic_0001>
module attributes {stable_mosaic.version = 11 : i64} {
  func.func @policy_net_kernel(%arg0: i32, %arg1: memref<8x8xf32, #tpu.memory_space<vmem>>, %arg2: memref<11x32xf32, #tpu.memory_space<vmem>>, %arg3: memref<8x1xf32, #tpu.memory_space<vmem>>) attributes {dimension_semantics = [#tpu.dimension_semantics<parallel>], iteration_bounds = array<i64: 1>, scalar_prefetch = 0 : i64, scratch_operands = 0 : i64, tpu.core_type = #tpu.core_type<tc>, window_params = [{transform_indices = @transform_0, window_bounds = array<i64: 8, 8>}, {pipeline_mode = #tpu.pipeline_mode<synchronous>, transform_indices = @transform_1, window_bounds = array<i64: 11, 32>}, {transform_indices = @transform_2, window_bounds = array<i64: 8, 1>}]} {
    %c0 = arith.constant 0 : index
    %c0_0 = arith.constant 0 : index
    %0 = vector.load %arg1[%c0, %c0_0] : memref<8x8xf32, #tpu.memory_space<vmem>>, vector<8x8xf32>
    %c0_1 = arith.constant 0 : index
    %c0_2 = arith.constant 0 : index
    %1 = vector.load %arg2[%c0_1, %c0_2] : memref<11x32xf32, #tpu.memory_space<vmem>>, vector<11x32xf32>
    %2 = vector.extract_strided_slice %1 {offsets = [0, 0], sizes = [8, 32], strides = [1, 1]} : vector<11x32xf32> to vector<8x32xf32>
    %3 = vector.extract_strided_slice %1 {offsets = [8, 0], sizes = [1, 32], strides = [1, 1]} : vector<11x32xf32> to vector<1x32xf32>
    %4 = vector.extract_strided_slice %1 {offsets = [9, 0], sizes = [1, 32], strides = [1, 1]} : vector<11x32xf32> to vector<1x32xf32>
    %5 = vector.extract_strided_slice %1 {offsets = [10, 0], sizes = [1, 1], strides = [1, 1]} : vector<11x32xf32> to vector<1x1xf32>
    %cst = arith.constant dense<0.000000e+00> : vector<8x32xf32>
    %6 = tpu.matmul %0, %2, %cst {dimension_numbers = #tpu.dot_dimension_numbers<[1], [0], [0], [1], [0, 0, 1, 1], [], []>} : vector<8x8xf32>, vector<8x32xf32>, vector<8x32xf32> -> vector<8x32xf32>
    %7 = vector.broadcast %3 : vector<1x32xf32> to vector<8x32xf32>
    %8 = arith.addf %6, %7 : vector<8x32xf32>
    %cst_3 = arith.constant 0.000000e+00 : f32
    %9 = vector.broadcast %cst_3 : f32 to vector<8x32xf32>
    %10 = arith.maximumf %8, %9 : vector<8x32xf32>
    %11 = vector.broadcast %4 : vector<1x32xf32> to vector<8x32xf32>
    %12 = arith.mulf %10, %11 : vector<8x32xf32>
    %cst_4 = arith.constant dense<0.000000e+00> : vector<8xf32>
    %13 = vector.multi_reduction <add>, %12, %cst_4 [1] : vector<8x32xf32> to vector<8xf32>
    %14 = vector.shape_cast %13 : vector<8xf32> to vector<8x1xf32>
    %15 = vector.broadcast %5 : vector<1x1xf32> to vector<8x1xf32>
    %16 = arith.addf %14, %15 : vector<8x1xf32>
    %17 = math.tanh %16 : vector<8x1xf32>
    %c0_5 = arith.constant 0 : index
    %c0_6 = arith.constant 0 : index
    %18 = vector.load %arg3[%c0_5, %c0_6] : memref<8x1xf32, #tpu.memory_space<vmem>>, vector<8x1xf32>
    tpu.vector_store %arg3[%c0_5, %c0_6], %17 {strides = array<i32>} : memref<8x1xf32, #tpu.memory_space<vmem>>, vector<8x1xf32>,
    return
  }
  func.func @transform_0(%arg0: i32) -> (i32, i32) {
    %c0_i32 = arith.constant 0 : i32
    %c0_i32_0 = arith.constant 0 : i32
    return %arg0, %c0_i32 : i32, i32
  }
  func.func @transform_1(%arg0: i32) -> (i32, i32) {
    %c0_i32 = arith.constant 0 : i32
    %c0_i32_0 = arith.constant 0 : i32
    %c0_i32_1 = arith.constant 0 : i32
    return %c0_i32, %c0_i32_0 : i32, i32
  }
  func.func @transform_2(%arg0: i32) -> (i32, i32) {
    %c0_i32 = arith.constant 0 : i32
    %c0_i32_0 = arith.constant 0 : i32
    return %arg0, %c0_i32 : i32, i32
  }
}

</mosaic_0001>

<llo_original>
// kernel: tpu_custom_call.1
$region0: #{tpu_custom_call.1}
  #allocation0 [shape = 'u32[]', space=smem, size = 0x4, offset = 0x4, fixed_abs, tag = 'smem constant byte address 0x4 - core index']
  #allocation1 [shape = 'u32[144,128]{1,0:T(1,128)}', space=vmem, size = 0x12000, scoped, tag = 'internal scratch']
  %s0 = inlined_call_operand.hbm [shape: f32[8,8], index: 0, kind: input, shape index: {}]
  %s1 = inlined_call_operand.hbm [shape: f32[11,32], index: 1, kind: input, shape index: {}]
  %s2 = inlined_call_operand.vmem [shape: f32[8,1], index: 2, kind: output, shape index: {}]
  %s3 = sld [smem:[#allocation0]]
  $region26: #{tpu_custom_call.1} parent=0
    _
  %s5 = ssub.s32 1, %s3
  %s6 = scalar_select 0, %s5, %s3
  $region1: #{tpu_custom_call.1} parent=0
    #allocation2 [shape = 'u8[4096]{0}', space=vmem, size = 0x1000, scoped, tag = 'input window, operand 0, single buffered']
    #allocation3 [shape = 's32[1]{0}', space=sflag, size = 0x4, scoped, tag = 'scoped memory for tpu_custom_call.1']
    #allocation4 [shape = 'u8[8192]{0}', space=vmem, size = 0x2000, scoped, tag = 'input window, operand 1, single buffered']
    #allocation5 [shape = 's32[1]{0}', space=sflag, size = 0x4, scoped, tag = 'scoped memory for tpu_custom_call.1']
    %7 = vsyncpa [#allocation3], 0
    %8 = vsyncpa [#allocation5], 0
    // Predicated region
    $region2: #{tpu_custom_call.1} parent=1 // pred_check
      _
    $region3: #{tpu_custom_call.1} parent=1 // pred_check_branch
      %10 = sbr.rel (0) target = $region5
    $region4: #{tpu_custom_call.1} parent=1 // pred_region
      %s12 = ssub.s32 128, 128
      %13 = vsyncadd [#allocation3], %s12
      %s15 = sshll.u32 [#allocation2], 4
      %s16 = int_to_ptr.vmem [resolvable:$true] %s15
      %18 = dma.hbm_to_vmem [thread:$0]  %s0, 128, %s16, [#allocation3]
    $region5: #{tpu_custom_call.1} parent=1 // pred_fallthru
      _
    // Predicated region
    $region6: #{tpu_custom_call.1} parent=1 // pred_check
      _
    $region7: #{tpu_custom_call.1} parent=1 // pred_check_branch
      %20 = sbr.rel (0) target = $region9
    $region8: #{tpu_custom_call.1} parent=1 // pred_region
      %s22 = ssub.s32 256, 256
      %23 = vsyncadd [#allocation5], %s22
      %s24 = sshll.u32 [#allocation4], 4
      %s25 = int_to_ptr.vmem [resolvable:$true] %s24
      %30 = dma.hbm_to_vmem [thread:$0]  %s1, 256, %s25, [#allocation5], 128, 128, 8
    $region9: #{tpu_custom_call.1} parent=1 // pred_fallthru
      _
    // Predicated region
    $region10: #{tpu_custom_call.1} parent=1 // pred_check
      _
    $region11: #{tpu_custom_call.1} parent=1 // pred_check_branch
      %32 = sbr.rel (0) target = $region13
    $region12: #{tpu_custom_call.1} parent=1 // pred_region
      %33 = dma.done [#allocation3], 128
    $region13: #{tpu_custom_call.1} parent=1 // pred_fallthru
      _
    // Predicated region
    $region14: #{tpu_custom_call.1} parent=1 // pred_check
      _
    $region15: #{tpu_custom_call.1} parent=1 // pred_check_branch
      %35 = sbr.rel (0) target = $region17
    $region16: #{tpu_custom_call.1} parent=1 // pred_region
      %36 = dma.done [#allocation5], 256
    $region17: #{tpu_custom_call.1} parent=1 // pred_fallthru
      _
    %v37 = vld [vmem:[#allocation2] sm:$0xff]
    %v38 = vld [vmem:[#allocation4] sm:$0xff]
    %v39 = vld [vmem:[#allocation4 + $0x8] sm:$0x7]
    %v40 = vlaneseq
    %v41 = vshrl.u32 %v40, 7
    %v42 = vsub.s32 0, %v41
    %v43 = vrot.slane %v39, %v42
    %vm44 = vcmask 64512
    %v46 = vsel %vm44, %v37, 0
    %48 = vmatprep.subr.mxu0 0.0
    %49 = vmatpush1.msra.mxu0 %v38
    %50 = vmatprep.subr.mxu0 0.0
    %51 = vmatpush1.msra.mxu0 0.0
    %52 = vmatprep.subr.mxu0 0.0
    %53 = vmatpush1.msra.mxu0 0.0
    %54 = vmatprep.subr.mxu0 0.0
    %55 = vmatpush1.msra.mxu0 0.0
    %56 = vmatprep.subr.mxu0 0.0
    %57 = vmatpush1.msra.mxu0 0.0
    %58 = vmatprep.subr.mxu0 0.0
    %59 = vmatpush1.msra.mxu0 0.0
    %60 = vmatprep.subr.mxu0 0.0
    %61 = vmatpush1.msra.mxu0 0.0
    %62 = vmatprep.subr.mxu0 0.0
    %63 = vmatpush1.msra.mxu0 0.0
    %64 = vmatprep.subr.mxu0 0.0
    %65 = vmatpush1.msra.mxu0 0.0
    %66 = vmatprep.subr.mxu0 0.0
    %67 = vmatpush1.msra.mxu0 0.0
    %68 = vmatprep.subr.mxu0 0.0
    %69 = vmatpush1.msra.mxu0 0.0
    %70 = vmatprep.subr.mxu0 0.0
    %71 = vmatpush1.msra.mxu0 0.0
    %72 = vmatprep.subr.mxu0 0.0
    %73 = vmatpush1.msra.mxu0 0.0
    %74 = vmatprep.subr.mxu0 0.0
    %75 = vmatpush1.msra.mxu0 0.0
    %76 = vmatprep.subr.mxu0 0.0
    %77 = vmatpush1.msra.mxu0 0.0
    %78 = vmatprep.subr.mxu0 0.0
    %79 = vmatpush1.msra.mxu0 0.0
    %80 = vmatprep.subr.mxu0 0.0
    %81 = vmatpush1.msra.mxu0 0.0
    %82 = vmatprep.subr.mxu0 0.0
    %83 = vmatpush1.msra.mxu0 0.0
    %84 = vmatprep.subr.mxu0 0.0
    %85 = vmatpush1.msra.mxu0 0.0
    %86 = vmatprep.subr.mxu0 0.0
    %87 = vmatpush1.msra.mxu0 0.0
    %88 = vmatprep.subr.mxu0 0.0
    %89 = vmatpush1.msra.mxu0 0.0
    %90 = vmatprep.subr.mxu0 0.0
    %91 = vmatpush1.msra.mxu0 0.0
    %92 = vmatprep.subr.mxu0 0.0
    %93 = vmatpush1.msra.mxu0 0.0
    %94 = vmatprep.subr.mxu0 0.0
    %95 = vmatpush1.msra.mxu0 0.0
    %96 = vmatprep.subr.mxu0 0.0
    %97 = vmatpush1.msra.mxu0 0.0
    %98 = vmatprep.subr.mxu0 0.0
    %99 = vmatpush1.msra.mxu0 0.0
    %100 = vmatprep.subr.mxu0 0.0
    %101 = vmatpush1.msra.mxu0 0.0
    %102 = vmatprep.subr.mxu0 0.0
    %103 = vmatpush1.msra.mxu0 0.0
    %104 = vmatprep.subr.mxu0 0.0
    %105 = vmatpush1.msra.mxu0 0.0
    %106 = vmatprep.subr.mxu0 0.0
    %107 = vmatpush1.msra.mxu0 0.0
    %108 = vmatprep.subr.mxu0 0.0
    %109 = vmatpush1.msra.mxu0 0.0
    %110 = vmatprep.subr.mxu0 0.0
    %111 = vmatpush1.msra.mxu0 0.0
    %112 = vmatprep.mubr.f32.mxu0 0.0
    %113 = vmatmul.mubr.f32.gmra.mrb[0].mxu0 %v46
    %v114 = vpop.f32.mrb[0].mxu0
    %v115 = vadd.f32 %v43, %v114
    %v116 = vpop.f32.mrb[0].mxu0
    %117 = vdwg.mxu0
    %v118 = vmax.f32 %v115, 0.0
    %v119 = vlaneseq
    %v120 = vshrl.u32 %v119, 7
    %v121 = vsub.s32 1, %v120
    %v122 = vrot.slane %v39, %v121
    %v123 = vmul.f32 %v118, %v122
    %vm124 = vcmask 261120
    %v125 = vsel %vm124, %v123, 0.0
    %126 = vadd.xlane.f32.xlu0 %v125
    %v127 = vpop.xlane.xlu0 %126
    %v128 = vlaneseq
    %v129 = vshrl.u32 %v128, 7
    %v130 = vsub.s32 2, %v129
    %v131 = vrot.slane %v39, %v130
    %v132 = vadd.f32 %v127, %v131
    %v133 = vtanh.pop %v132
    %vm134 = vcmask 7168
    %135 = vst.msk [vmem:[%s2] sm:$0xff] %vm134, %v133
    // Predicated region
    $region18: #{tpu_custom_call.1} parent=1 // pred_check
      _
    $region19: #{tpu_custom_call.1} parent=1 // pred_check_branch
      %137 = sbr.rel (0) target = $region21
    $region20: #{tpu_custom_call.1} parent=1 // pred_region
      _
    $region21: #{tpu_custom_call.1} parent=1 // pred_fallthru
      _
    // Predicated region
    $region22: #{tpu_custom_call.1} parent=1 // pred_check
      _
    $region23: #{tpu_custom_call.1} parent=1 // pred_check_branch
      %139 = sbr.rel (0) target = $region25
    $region24: #{tpu_custom_call.1} parent=1 // pred_region
      _
    $region25: #{tpu_custom_call.1} parent=1 // pred_fallthru
      _
    %140 = vsyncpa [#allocation3], 1
    %141 = vsyncpa [#allocation5], 1

</llo_original>
